<compile_context>
chip_gen: v6e
topology: v6e:2x2x1
jax: 0.10.0
libtpu: 0.0.40
codegen_flags: <defaults>
</compile_context>

<pallas_src>
import jax
import jax.numpy as jnp
from jax.experimental import pallas as pl
from jax.experimental.pallas import tpu as pltpu

EPS = 1e-5                         # nn.BatchNorm2d default
_VMEM_LIMIT = 32 * 1024 * 1024     # safe scoped limit on v5e / v6e / v7x
_TILE_BUDGET = 4 * 1024 * 1024     # per-tile budget in f32-compute bytes
_FUSED_MAX = 4 * 1024 * 1024       # padded-f32 slab limit for the fused path


def _sublane_pack(itemsize: int) -> int:
    """Native sublane packing for the dtype: 8 rows (32b), 16 (16b), 32 (8b)."""
    return {1: 32, 2: 16}.get(itemsize, 8)


def _pick_lane_tile(hw: int) -> int:
    """Largest multiple of 128 dividing HW, capped by the tile budget
    (lane-dense => unmasked full-width vst, long contiguous DMA rows)."""
    if hw % 128 != 0:
        return hw                  # full-dim block (allowed by the (8,128) rule)
    cap = max(1, _TILE_BUDGET // (128 * 8 * 4))     # in units of 128 lanes
    k = min(hw // 128, cap)
    while k > 1 and hw % (128 * k) != 0:
        k -= 1
    return 128 * k


def _pick_row_tile(nr: int, lane_t: int, itemsize: int, min_blocks: int = 4) -> int:
    """Largest packing-aligned divisor of NR within the byte budget, keeping at
    least `min_blocks` row blocks when possible (megacore / v7x 2-TC sharding)."""
    sub = _sublane_pack(itemsize)
    if nr % sub != 0:
        return nr                  # un-tileable sublane dim: take it whole
    max_rows = max(sub, _TILE_BUDGET // (lane_t * 4))
    if nr // sub >= min_blocks:
        max_rows = min(max_rows, nr // min_blocks)
    best = sub
    r = sub
    while r <= nr:
        if r <= max_rows and nr % r == 0:
            best = r
        r += sub
    return best


# --------------------------------------------------------------------------
# Fused fits-in-VMEM kernel: whole (N, C, HW) slab resident, 1R + 1W traffic.
# --------------------------------------------------------------------------
def _fused_kernel(x_ref, g_ref, b_ref, o_ref):
    # x_ref/o_ref: (N, C, HW); g_ref/b_ref: (N, C, 1)
    x = x_ref[...].astype(jnp.float32)
    cnt = jnp.float32(x_ref.shape[0] * x_ref.shape[2])          # N * H * W
    s = jnp.sum(x, axis=2, keepdims=True)                       # (N, C, 1) lane reduce
    q = jnp.sum(x * x, axis=2, keepdims=True)                   # (N, C, 1)
    ch_sum = jnp.sum(s, axis=0, keepdims=True)                  # (1, C, 1) slab adds
    ch_sq = jnp.sum(q, axis=0, keepdims=True)                   # (1, C, 1)
    mean = ch_sum / cnt
    var = jnp.maximum(ch_sq / cnt - mean * mean, 0.0)           # clamp: cancellation
    inv_std = jax.lax.rsqrt(var + EPS)                          # EUP
    a = g_ref[...].astype(jnp.float32) * inv_std                # (N, C, 1)
    b = b_ref[...].astype(jnp.float32) - mean * a               # (N, C, 1)
    o_ref[...] = (a * x + b).astype(o_ref.dtype)


# --------------------------------------------------------------------------
# Tiled path, phase 1: per-(n, c) row sums of x and x^2, packed into (NR, 2).
# --------------------------------------------------------------------------
def _stats_kernel(x_ref, stats_ref):
    # x_ref: (R, T).  stats_ref: (R, 2) accumulator, resident across lane axis.
    @pl.when(pl.program_id(1) == 0)
    def _init():
        stats_ref[...] = jnp.zeros_like(stats_ref)

    x = x_ref[...].astype(jnp.float32)
    stats_ref[:, 0:1] += jnp.sum(x, axis=1, keepdims=True)
    stats_ref[:, 1:2] += jnp.sum(x * x, axis=1, keepdims=True)


# --------------------------------------------------------------------------
# Tiled path, phase 2: out = a * x + b (per-row a, b packed in one (NR, 2)).
# --------------------------------------------------------------------------
def _apply_kernel(x_ref, ab_ref, o_ref):
    x = x_ref[...].astype(jnp.float32)
    a = ab_ref[:, 0:1]
    b = ab_ref[:, 1:2]
    o_ref[...] = (a * x + b).astype(o_ref.dtype)


def conditional_batchnorm2d(x, c, embed_weight, *, fused_max_bytes=_FUSED_MAX):
    """x: (N, C, H, W); c: (N,) int32 class ids; embed_weight: (num_classes, 2C)."""
    N, C, H, W = x.shape
    NR, HW = N * C, H * W
    itemsize = jnp.dtype(x.dtype).itemsize

    # Embedding row-gather stays in JAX (tiny, data-dependent).
    gb = embed_weight[c].astype(jnp.float32)        # (N, 2C)
    gamma, beta = gb[:, :C], gb[:, C:]              # (N, C) each

    # ---- fused fast path: whole slab resident in VMEM -----------------------
    pad_c = -(-C // 8) * 8
    pad_hw = -(-HW // 128) * 128
    padded_f32_bytes = N * pad_c * pad_hw * 4
    if padded_f32_bytes <= fused_max_bytes:
        x3 = x.reshape(N, C, HW)
        out3 = pl.pallas_call(
            _fused_kernel,
            out_shape=jax.ShapeDtypeStruct((N, C, HW), x.dtype),
            compiler_params=pltpu.CompilerParams(vmem_limit_bytes=_VMEM_LIMIT),
            cost_estimate=pl.CostEstimate(
                flops=5 * N * C * HW, transcendentals=C,
                bytes_accessed=2 * x.size * itemsize),
        )(x3, gamma.reshape(N, C, 1), beta.reshape(N, C, 1))
        return out3.reshape(N, C, H, W)

    # ---- tiled two-phase path ------------------------------------------------
    lane_t = _pick_lane_tile(HW)
    row_t = _pick_row_tile(NR, lane_t, itemsize)
    grid = (NR // row_t, HW // lane_t)
    x2 = x.reshape(NR, HW)

    # phase 1: per-(n, c) sums of x and x^2
    stats = pl.pallas_call(
        _stats_kernel,
        out_shape=jax.ShapeDtypeStruct((NR, 2), jnp.float32),
        grid=grid,
        in_specs=[pl.BlockSpec((row_t, lane_t), lambda r, j: (r, j))],
        out_specs=pl.BlockSpec((row_t, 2), lambda r, j: (r, 0)),
        compiler_params=pltpu.CompilerParams(
            dimension_semantics=("parallel", "arbitrary"),
            vmem_limit_bytes=_VMEM_LIMIT),
        cost_estimate=pl.CostEstimate(
            flops=3 * NR * HW, transcendentals=0,
            bytes_accessed=x.size * itemsize + NR * 8),
    )(x2)

    # tiny glue: per-channel batch stats with the TRUE count, fold the affine
    cnt = jnp.float32(N * H * W)
    ch_sum = stats[:, 0].reshape(N, C).sum(axis=0)      # (C,)
    ch_sq = stats[:, 1].reshape(N, C).sum(axis=0)       # (C,)
    mean = ch_sum / cnt
    var = jnp.maximum(ch_sq / cnt - mean * mean, 0.0)
    inv_std = jax.lax.rsqrt(var + EPS)
    a = gamma * inv_std[None, :]                        # (N, C)
    b = beta - mean[None, :] * a                        # (N, C)
    ab = jnp.stack([a.reshape(NR), b.reshape(NR)], axis=1)   # (NR, 2)

    # phase 2: out = a * x + b  (fully parallel, lane-dense tiles)
    out = pl.pallas_call(
        _apply_kernel,
        out_shape=jax.ShapeDtypeStruct((NR, HW), x.dtype),
        grid=grid,
        in_specs=[pl.BlockSpec((row_t, lane_t), lambda r, j: (r, j)),
                  pl.BlockSpec((row_t, 2), lambda r, j: (r, 0))],
        out_specs=pl.BlockSpec((row_t, lane_t), lambda r, j: (r, j)),
        compiler_params=pltpu.CompilerParams(
            dimension_semantics=("parallel", "parallel"),
            vmem_limit_bytes=_VMEM_LIMIT),
        cost_estimate=pl.CostEstimate(
            flops=2 * NR * HW, transcendentals=0,
            bytes_accessed=2 * x.size * itemsize + NR * 8),
    )(x2, ab)

    return out.reshape(N, C, H, W)


if __name__ == "__main__":
    # Module hyperparameters (small, consistent with the nn.Module __init__)
    in_channels = 4
    num_classes = 10
    N, C, H, W = 2, in_channels, 16, 16

    key = jax.random.PRNGKey(0)
    k_x, k_c, k_emb = jax.random.split(key, 3)

    x = jax.random.normal(k_x, (N, C, H, W), dtype=jnp.float32)
    c = jax.random.randint(k_c, (N,), 0, num_classes, dtype=jnp.int32)

    # Deterministic init matching init_weights():
    #   embed.weight[:, :C] ~ Normal(1, 0.02); embed.weight[:, C:] = 0
    gamma_init = 1.0 + 0.02 * jax.random.normal(
        k_emb, (num_classes, in_channels), dtype=jnp.float32)
    beta_init = jnp.zeros((num_classes, in_channels), dtype=jnp.float32)
    embed_weight = jnp.concatenate([gamma_init, beta_init], axis=1)  # (nc, 2C)

    # Pure-JAX reference (training-mode batch norm, biased variance)
    mean = jnp.mean(x, axis=(0, 2, 3), keepdims=True)
    var = jnp.mean((x - mean) ** 2, axis=(0, 2, 3), keepdims=True)
    x_hat = (x - mean) / jnp.sqrt(var + EPS)
    gb = embed_weight[c]
    ref = gb[:, :C, None, None] * x_hat + gb[:, C:, None, None]

    # 1) fused fits-in-VMEM fast path (the one this shape actually takes)
    out_fused = jax.block_until_ready(conditional_batchnorm2d(x, c, embed_weight))
    assert jnp.allclose(out_fused, ref, atol=1e-4, rtol=1e-4), "fused path mismatch"

    # 2) tiled two-phase path (forced, to keep the large-input path exercised)
    out_tiled = jax.block_until_ready(
        conditional_batchnorm2d(x, c, embed_weight, fused_max_bytes=0))
    assert jnp.allclose(out_tiled, ref, atol=1e-4, rtol=1e-4), "tiled path mismatch"

    print("KERNEL_OK")
</pallas_src>

<mosaic_0001>
module attributes {stable_mosaic.version = 11 : i64} {
  func.func @_fused_kernel(%arg0: memref<2x4x256xf32, #tpu.memory_space<vmem>>, %arg1: memref<2x4x1xf32, #tpu.memory_space<vmem>>, %arg2: memref<2x4x1xf32, #tpu.memory_space<vmem>>, %arg3: memref<2x4x256xf32, #tpu.memory_space<vmem>>) attributes {dimension_semantics = [], scalar_prefetch = 0 : i64, scratch_operands = 0 : i64, tpu.core_type = #tpu.core_type<tc>} {
    %c0 = arith.constant 0 : index
    %c0_0 = arith.constant 0 : index
    %c0_1 = arith.constant 0 : index
    %0 = vector.load %arg0[%c0, %c0_0, %c0_1] : memref<2x4x256xf32, #tpu.memory_space<vmem>>, vector<2x4x256xf32>
    %cst = arith.constant dense<0.000000e+00> : vector<2x4xf32>
    %1 = vector.multi_reduction <add>, %0, %cst [2] : vector<2x4x256xf32> to vector<2x4xf32>
    %2 = vector.shape_cast %1 : vector<2x4xf32> to vector<2x4x1xf32>
    %3 = arith.mulf %0, %0 : vector<2x4x256xf32>
    %cst_2 = arith.constant dense<0.000000e+00> : vector<2x4xf32>
    %4 = vector.multi_reduction <add>, %3, %cst_2 [2] : vector<2x4x256xf32> to vector<2x4xf32>
    %5 = vector.shape_cast %4 : vector<2x4xf32> to vector<2x4x1xf32>
    %cst_3 = arith.constant dense<0.000000e+00> : vector<4x1xf32>
    %6 = vector.multi_reduction <add>, %2, %cst_3 [0] : vector<2x4x1xf32> to vector<4x1xf32>
    %7 = vector.shape_cast %6 : vector<4x1xf32> to vector<1x4x1xf32>
    %cst_4 = arith.constant dense<0.000000e+00> : vector<4x1xf32>
    %8 = vector.multi_reduction <add>, %5, %cst_4 [0] : vector<2x4x1xf32> to vector<4x1xf32>
    %9 = vector.shape_cast %8 : vector<4x1xf32> to vector<1x4x1xf32>
    %cst_5 = arith.constant 5.120000e+02 : f32
    %10 = vector.broadcast %cst_5 : f32 to vector<1x4x1xf32>
    %11 = arith.divf %7, %10 : vector<1x4x1xf32>
    %cst_6 = arith.constant 5.120000e+02 : f32
    %12 = vector.broadcast %cst_6 : f32 to vector<1x4x1xf32>
    %13 = arith.divf %9, %12 : vector<1x4x1xf32>
    %14 = arith.mulf %11, %11 : vector<1x4x1xf32>
    %15 = arith.subf %13, %14 : vector<1x4x1xf32>
    %cst_7 = arith.constant 0.000000e+00 : f32
    %16 = vector.broadcast %cst_7 : f32 to vector<1x4x1xf32>
    %17 = arith.maximumf %15, %16 : vector<1x4x1xf32>
    %cst_8 = arith.constant 9.99999974E-6 : f32
    %18 = vector.broadcast %cst_8 : f32 to vector<1x4x1xf32>
    %19 = arith.addf %17, %18 : vector<1x4x1xf32>
    %20 = math.rsqrt %19 : vector<1x4x1xf32>
    %c0_9 = arith.constant 0 : index
    %c0_10 = arith.constant 0 : index
    %c0_11 = arith.constant 0 : index
    %21 = vector.load %arg1[%c0_9, %c0_10, %c0_11] : memref<2x4x1xf32, #tpu.memory_space<vmem>>, vector<2x4x1xf32>
    %22 = vector.broadcast %20 : vector<1x4x1xf32> to vector<2x4x1xf32>
    %23 = arith.mulf %21, %22 : vector<2x4x1xf32>
    %c0_12 = arith.constant 0 : index
    %c0_13 = arith.constant 0 : index
    %c0_14 = arith.constant 0 : index
    %24 = vector.load %arg2[%c0_12, %c0_13, %c0_14] : memref<2x4x1xf32, #tpu.memory_space<vmem>>, vector<2x4x1xf32>
    %25 = vector.broadcast %11 : vector<1x4x1xf32> to vector<2x4x1xf32>
    %26 = arith.mulf %25, %23 : vector<2x4x1xf32>
    %27 = arith.subf %24, %26 : vector<2x4x1xf32>
    %28 = vector.broadcast %23 : vector<2x4x1xf32> to vector<2x4x256xf32>
    %29 = arith.mulf %28, %0 : vector<2x4x256xf32>
    %30 = vector.broadcast %27 : vector<2x4x1xf32> to vector<2x4x256xf32>
    %31 = arith.addf %29, %30 : vector<2x4x256xf32>
    %c0_15 = arith.constant 0 : index
    %c0_16 = arith.constant 0 : index
    %c0_17 = arith.constant 0 : index
    %32 = vector.load %arg3[%c0_15, %c0_16, %c0_17] : memref<2x4x256xf32, #tpu.memory_space<vmem>>, vector<2x4x256xf32>
    tpu.vector_store %arg3[%c0_15, %c0_16, %c0_17], %31 {strides = array<i32>} : memref<2x4x256xf32, #tpu.memory_space<vmem>>, vector<2x4x256xf32>,
    return
  }
}

</mosaic_0001>

<llo_original>
// kernel: tpu_custom_call.1
$region0: #{tpu_custom_call.1}
  #allocation0 [shape = 'u32[]', space=smem, size = 0x4, offset = 0x4, fixed_abs, tag = 'smem constant byte address 0x4 - core index']
  #allocation1 [shape = 'u32[144,128]{1,0:T(1,128)}', space=vmem, size = 0x12000, scoped, tag = 'internal scratch']
  %s0 = inlined_call_operand.vmem [shape: f32[2,4,256], index: 0, kind: input, shape index: {}]
  %s1 = inlined_call_operand.vmem [shape: f32[2,4,1], index: 1, kind: input, shape index: {}]
  %s2 = inlined_call_operand.vmem [shape: f32[2,4,1], index: 2, kind: input, shape index: {}]
  %s3 = inlined_call_operand.hbm [shape: f32[2,4,256], index: 3, kind: output, shape index: {}]
  %s4 = sld [smem:[#allocation0]]
  $region22: #{tpu_custom_call.1} parent=0
    _
  %s6 = ssub.s32 1, %s4
  %s7 = scalar_select 0, %s6, %s4
  $region1: #{tpu_custom_call.1} parent=0
    #allocation2 [shape = 'u8[8192]{0}', space=vmem, size = 0x2000, scoped, tag = 'output window, operand 0, single buffered']
    #allocation3 [shape = 's32[1]{0}', space=sflag, size = 0x4, scoped, tag = 'scoped memory for tpu_custom_call.1']
    %8 = vsyncpa [#allocation3], 0
    // Predicated region
    $region2: #{tpu_custom_call.1} parent=1 // pred_check
      _
    $region3: #{tpu_custom_call.1} parent=1 // pred_check_branch
      %10 = sbr.rel (0) target = $region5
    $region4: #{tpu_custom_call.1} parent=1 // pred_region
      _
    $region5: #{tpu_custom_call.1} parent=1 // pred_fallthru
      _
    // Predicated region
    $region6: #{tpu_custom_call.1} parent=1 // pred_check
      _
    $region7: #{tpu_custom_call.1} parent=1 // pred_check_branch
      %12 = sbr.rel (0) target = $region9
    $region8: #{tpu_custom_call.1} parent=1 // pred_region
      _
    $region9: #{tpu_custom_call.1} parent=1 // pred_fallthru
      _
    // Predicated region
    $region10: #{tpu_custom_call.1} parent=1 // pred_check
      _
    $region11: #{tpu_custom_call.1} parent=1 // pred_check_branch
      %14 = sbr.rel (0) target = $region13
    $region12: #{tpu_custom_call.1} parent=1 // pred_region
      _
    $region13: #{tpu_custom_call.1} parent=1 // pred_fallthru
      _
    %v15 = vld [vmem:[%s0] sm:$0xff]
    %v16 = vld [vmem:[%s0 + $0x8] sm:$0xff]
    %v19 = vcombine.high %v15, %v15
    %v20 = vcombine.high %v16, %v16
    %vm23 = vcmask 1043456
    %v24 = vsel %vm23, %v15, 0.0
    %v25 = vsel %vm23, %v19, 0.0
    %v26 = vadd.f32 %v24, %v25
    %27 = vadd.xlane.f32.xlu0 %v26
    %v28 = vpop.xlane.xlu0 %27
    %v29 = vsel %vm23, %v16, 0.0
    %v30 = vsel %vm23, %v20, 0.0
    %v31 = vadd.f32 %v29, %v30
    %32 = vadd.xlane.f32.xlu0 %v31
    %v33 = vpop.xlane.xlu0 %32
    %v34 = vmul.f32 %v15, %v15
    %v35 = vmul.f32 %v16, %v16
    %v38 = vcombine.high %v34, %v34
    %v39 = vcombine.high %v35, %v35
    %v42 = vsel %vm23, %v34, 0.0
    %v43 = vsel %vm23, %v38, 0.0
    %v44 = vadd.f32 %v42, %v43
    %45 = vadd.xlane.f32.xlu0 %v44
    %v46 = vpop.xlane.xlu0 %45
    %v47 = vsel %vm23, %v35, 0.0
    %v48 = vsel %vm23, %v39, 0.0
    %v49 = vadd.f32 %v47, %v48
    %50 = vadd.xlane.f32.xlu0 %v49
    %v51 = vpop.xlane.xlu0 %50
    %v52 = vsel %vm23, %v28, 0.0
    %v53 = vsel %vm23, %v33, 0.0
    %v54 = vadd.f32 %v52, %v53
    %v55 = vsel %vm23, %v46, 0.0
    %v56 = vsel %vm23, %v51, 0.0
    %v57 = vadd.f32 %v55, %v56
    %v58 = vrcp.pop 512.0
    %v59 = vmul.f32 %v54, %v58
    %v60 = vmul.f32 %v57, %v58
    %v61 = vmul.f32 %v59, %v59
    %v62 = vsub.f32 %v60, %v61
    %v63 = vmax.f32 %v62, 0.0
    %v64 = vadd.f32 %v63, 1e-05
    %v65 = vrsqrt.pop %v64
    %v66 = vld [vmem:[%s1] sm:$0xf]
    %v67 = vld [vmem:[%s1 + $0x4] sm:$0xf]
    %v68 = vmul.f32 %v66, %v65
    %v69 = vmul.f32 %v67, %v65
    %v70 = vld [vmem:[%s2] sm:$0xf]
    %v71 = vld [vmem:[%s2 + $0x4] sm:$0xf]
    %v72 = vmul.f32 %v59, %v68
    %v73 = vmul.f32 %v59, %v69
    %v74 = vsub.f32 %v70, %v72
    %v75 = vsub.f32 %v71, %v73
    %77 = vset.pattern.permute.xlu0 0
    %78 = vperm.xlu0 %77, %v68
    %v79 = vpop.permute.xlu0 %78
    %82 = vset.pattern.permute.xlu0 0
    %83 = vperm.xlu0 %82, %v69
    %v84 = vpop.permute.xlu0 %83
    %v86 = vmul.f32 %v79, %v15
    %v87 = vmul.f32 %v79, %v19
    %v88 = vmul.f32 %v84, %v16
    %v89 = vmul.f32 %v84, %v20
    %91 = vset.pattern.permute.xlu0 0
    %92 = vperm.xlu0 %91, %v74
    %v93 = vpop.permute.xlu0 %92
    %96 = vset.pattern.permute.xlu0 0
    %97 = vperm.xlu0 %96, %v75
    %v98 = vpop.permute.xlu0 %97
    %v100 = vadd.f32 %v86, %v93
    %v101 = vadd.f32 %v87, %v93
    %v102 = vadd.f32 %v88, %v98
    %v103 = vadd.f32 %v89, %v98
    %v108 = vcombine.low %v100, %v101
    %v109 = vcombine.low %v102, %v103
    %112 = vst [vmem:[#allocation2] sm:$0xff] %v108
    %113 = vst [vmem:[#allocation2 + $0x8] sm:$0xff] %v109
    // Predicated region
    $region14: #{tpu_custom_call.1} parent=1 // pred_check
      _
    $region15: #{tpu_custom_call.1} parent=1 // pred_check_branch
      %115 = sbr.rel (0) target = $region17
    $region16: #{tpu_custom_call.1} parent=1 // pred_region
      %s117 = ssub.s32 256, 256
      %118 = vsyncadd [#allocation3], %s117
      %s119 = sshll.u32 [#allocation2], 4
      %s120 = int_to_ptr.vmem [resolvable:$true] %s119
      %125 = dma.vmem_to_hbm [thread:$0]  %s120, 256, %s3, [#allocation3], 128, 128, 8
    $region17: #{tpu_custom_call.1} parent=1 // pred_fallthru
      _
    // Predicated region
    $region18: #{tpu_custom_call.1} parent=1 // pred_check
      _
    $region19: #{tpu_custom_call.1} parent=1 // pred_check_branch
      %127 = sbr.rel (0) target = $region21
    $region20: #{tpu_custom_call.1} parent=1 // pred_region
      %128 = dma.done [#allocation3], 256
    $region21: #{tpu_custom_call.1} parent=1 // pred_fallthru
      _
    %129 = vsyncpa [#allocation3], 1

</llo_original>
